<compile_context>
chip_gen: v6e
topology: v6e:2x2x1
jax: 0.10.0
libtpu: 0.0.40
codegen_flags: <defaults>
</compile_context>

<pallas_src>
import functools

import jax
import jax.numpy as jnp
from jax.experimental import pallas as pl
from jax.experimental.pallas import tpu as pltpu

LANES = 128
SUBLANES = 8
MAX_TILE_ROWS = 1024   # (1024, 128) f32 tile = 512 KiB per pipeline buffer


def _cdiv(a, b):
    return -(-a // b)


def _round_up(x, m):
    return _cdiv(x, m) * m


# ---------------------------------------------------------------------------
# Kernels
# ---------------------------------------------------------------------------
def _l1_sum_kernel(tile_rows, pred_ref, target_ref, out_ref):
    """Per-shard partial sum of |pred - target|.

    grid = (num_shards, tiles_per_shard).  The (1, 8, 128) output block keeps
    the same block index across the 'arbitrary' tile axis, so it stays
    resident in VMEM and acts as a vector accumulator.

    The (tile_rows, 128) -> (tile_rows//8, 8, 128) reshape is a pure layout
    split (identical memory order, each [i, :, :] slice is one vreg), so the
    axis-0 sum lowers to elementwise VPU adds over vregs — no per-step XLU or
    scalar reduction on the critical path.
    """
    @pl.when(pl.program_id(1) == 0)
    def _():
        out_ref[...] = jnp.zeros_like(out_ref)

    diff = jnp.abs(pred_ref[...] - target_ref[...])
    partial = diff.reshape(tile_rows // SUBLANES, SUBLANES, LANES).sum(axis=0)
    out_ref[0, :, :] += partial


def _l1_none_kernel(loss_weight, pred_ref, target_ref, out_ref):
    """Elementwise loss_weight * |pred - target| (reduction='none')."""
    out_ref[...] = loss_weight * jnp.abs(pred_ref[...] - target_ref[...])


# ---------------------------------------------------------------------------
# Tiling plans (all static Python ints under jit)
# ---------------------------------------------------------------------------
def _plan_elementwise(n_elems):
    rows = _round_up(_cdiv(n_elems, LANES), SUBLANES)
    tiles = _cdiv(rows, MAX_TILE_ROWS)
    tile_rows = _round_up(_cdiv(rows, tiles), SUBLANES)
    return tile_rows, tiles


def _plan_reduction(n_elems):
    rows = _round_up(_cdiv(n_elems, LANES), SUBLANES)
    tiles = _cdiv(rows, MAX_TILE_ROWS)
    # Two shards so v7x's two TensorCores each reduce half the tiles via the
    # 'parallel' grid axis; on v5e/v6e (one TC) the extra shard is a cheap
    # serial grid step.
    num_shards = 2 if tiles >= 2 else 1
    tiles = _round_up(tiles, num_shards)
    tile_rows = _round_up(_cdiv(rows, tiles), SUBLANES)
    return tile_rows, tiles, num_shards


def _to_slab(flat, total_rows):
    """Pad a flat f32 vector to total_rows*128 and reshape lane-dense.

    Under jit the pad/reshape fuse with the upstream real/imag stack into a
    single XLA copy, so this does not add an extra HBM round trip.  Padding is
    zeros, which contribute 0 to the L1 sum.
    """
    pad = total_rows * LANES - flat.shape[0]
    if pad:
        flat = jnp.pad(flat, (0, pad))
    return flat.reshape(total_rows, LANES)


# ---------------------------------------------------------------------------
# Wrapper
# ---------------------------------------------------------------------------
@functools.partial(jax.jit, static_argnames=("loss_weight", "reduction"))
def fft_loss_pallas(pred, target, *, loss_weight=1.0, reduction="mean"):
    """Pallas implementation of basicsr FFTLoss.forward."""
    if reduction not in ("none", "mean", "sum"):
        raise ValueError(f"Unsupported reduction mode: {reduction}")

    # TODO(synk): rfft2 has no Pallas TPU equivalent; it is computed with
    # jnp.fft.rfft2 (XLA) here and only the L1 criterion runs in Pallas.
    pred_fft = jnp.fft.rfft2(pred)
    target_fft = jnp.fft.rfft2(target)
    pred_ri = jnp.stack([pred_fft.real, pred_fft.imag], axis=-1)
    target_ri = jnp.stack([target_fft.real, target_fft.imag], axis=-1)
    stacked_shape = pred_ri.shape

    n_elems = 1
    for d in stacked_shape:
        n_elems *= int(d)

    pred_flat = pred_ri.reshape(-1).astype(jnp.float32)
    target_flat = target_ri.reshape(-1).astype(jnp.float32)

    if reduction == "none":
        tile_rows, tiles = _plan_elementwise(n_elems)
        total_rows = tiles * tile_rows
        pred_slab = _to_slab(pred_flat, total_rows)
        target_slab = _to_slab(target_flat, total_rows)

        tile_spec = pl.BlockSpec((tile_rows, LANES), lambda i: (i, 0))
        out2d = pl.pallas_call(
            functools.partial(_l1_none_kernel, float(loss_weight)),
            out_shape=jax.ShapeDtypeStruct((total_rows, LANES), jnp.float32),
            grid_spec=pltpu.PrefetchScalarGridSpec(
                num_scalar_prefetch=0,
                grid=(tiles,),
                in_specs=[tile_spec, tile_spec],
                out_specs=tile_spec),
            compiler_params=pltpu.CompilerParams(
                dimension_semantics=("parallel",)),
        )(pred_slab, target_slab)
        return out2d.reshape(-1)[:n_elems].reshape(stacked_shape)

    # 'mean' / 'sum': per-shard partial sums accumulated in a VMEM-resident
    # output block across the 'arbitrary' tile axis.
    tile_rows, tiles, num_shards = _plan_reduction(n_elems)
    tiles_per_shard = tiles // num_shards
    total_rows = tiles * tile_rows

    pred_slab = _to_slab(pred_flat, total_rows)
    target_slab = _to_slab(target_flat, total_rows)

    in_spec = pl.BlockSpec((tile_rows, LANES),
                           lambda s, t: (s * tiles_per_shard + t, 0))
    out_spec = pl.BlockSpec((1, SUBLANES, LANES), lambda s, t: (s, 0, 0))

    partials = pl.pallas_call(
        functools.partial(_l1_sum_kernel, tile_rows),
        out_shape=jax.ShapeDtypeStruct((num_shards, SUBLANES, LANES),
                                       jnp.float32),
        grid_spec=pltpu.PrefetchScalarGridSpec(
            num_scalar_prefetch=0,
            grid=(num_shards, tiles_per_shard),
            in_specs=[in_spec, in_spec],
            out_specs=out_spec),
        compiler_params=pltpu.CompilerParams(
            dimension_semantics=("parallel", "arbitrary")),
    )(pred_slab, target_slab)

    total = jnp.sum(partials)          # num_shards*8*128 values, negligible
    if reduction == "mean":
        total = total / jnp.float32(n_elems)
    return loss_weight * total


class FFTLossPallas:
    """Mirror of basicsr FFTLoss (loss_weight, reduction) using the Pallas L1 kernel."""

    def __init__(self, loss_weight=1.0, reduction="mean"):
        if reduction not in ("none", "mean", "sum"):
            raise ValueError(f"Unsupported reduction mode: {reduction}")
        self.loss_weight = float(loss_weight)
        self.reduction = reduction

    def __call__(self, pred, target):
        return fft_loss_pallas(pred, target,
                               loss_weight=self.loss_weight,
                               reduction=self.reduction)


# ---------------------------------------------------------------------------
# Pure-JAX reference for validation
# ---------------------------------------------------------------------------
def _fft_loss_ref(pred, target, loss_weight=1.0, reduction="mean"):
    p = jnp.fft.rfft2(pred)
    t = jnp.fft.rfft2(target)
    p = jnp.stack([p.real, p.imag], axis=-1)
    t = jnp.stack([t.real, t.imag], axis=-1)
    d = jnp.abs(p - t)
    if reduction == "mean":
        d = jnp.mean(d)
    elif reduction == "sum":
        d = jnp.sum(d)
    return loss_weight * d


if __name__ == "__main__":
    key = jax.random.PRNGKey(0)
    k1, k2, k3, k4 = jax.random.split(key, 4)

    # (N, C, H, W) as in the PyTorch module.
    N, C, H, W = 2, 4, 16, 16
    pred = jax.random.normal(k1, (N, C, H, W), dtype=jnp.float32)
    target = jax.random.normal(k2, (N, C, H, W), dtype=jnp.float32)

    # mean reduction (default)
    out_mean = jax.block_until_ready(FFTLossPallas(1.0, "mean")(pred, target))
    ref_mean = _fft_loss_ref(pred, target, 1.0, "mean")
    assert jnp.allclose(out_mean, ref_mean, rtol=1e-4, atol=1e-4), (out_mean, ref_mean)

    # sum reduction with loss_weight
    out_sum = jax.block_until_ready(FFTLossPallas(0.5, "sum")(pred, target))
    ref_sum = _fft_loss_ref(pred, target, 0.5, "sum")
    assert jnp.allclose(out_sum, ref_sum, rtol=1e-4, atol=1e-3), (out_sum, ref_sum)

    # none reduction (elementwise, shape (N, C, H, W//2+1, 2))
    out_none = jax.block_until_ready(FFTLossPallas(2.0, "none")(pred, target))
    ref_none = _fft_loss_ref(pred, target, 2.0, "none")
    assert out_none.shape == (N, C, H, W // 2 + 1, 2), out_none.shape
    assert jnp.allclose(out_none, ref_none, rtol=1e-4, atol=1e-4)

    # Larger case exercising the multi-tile / two-shard reduction path.
    H2 = W2 = 128
    pred2 = jax.random.normal(k3, (N, C, H2, W2), dtype=jnp.float32)
    target2 = jax.random.normal(k4, (N, C, H2, W2), dtype=jnp.float32)
    out2 = jax.block_until_ready(FFTLossPallas(1.0, "mean")(pred2, target2))
    ref2 = _fft_loss_ref(pred2, target2, 1.0, "mean")
    assert jnp.allclose(out2, ref2, rtol=1e-4, atol=1e-3), (out2, ref2)

    print("KERNEL_OK")
</pallas_src>

<mosaic_0001>
module attributes {stable_mosaic.version = 11 : i64} {
  func.func @_l1_sum_kernel(%arg0: i32, %arg1: i32, %arg2: memref<24x128xf32, #tpu.memory_space<vmem>>, %arg3: memref<24x128xf32, #tpu.memory_space<vmem>>, %arg4: memref<1x8x128xf32, #tpu.memory_space<vmem>>) attributes {dimension_semantics = [#tpu.dimension_semantics<parallel>, #tpu.dimension_semantics<arbitrary>], iteration_bounds = array<i64: 1, 1>, scalar_prefetch = 0 : i64, scratch_operands = 0 : i64, tpu.core_type = #tpu.core_type<tc>, window_params = [{transform_indices = @transform_0, window_bounds = array<i64: 24, 128>}, {transform_indices = @transform_1, window_bounds = array<i64: 24, 128>}, {transform_indices = @transform_2, window_bounds = array<i64: 1, 8, 128>}]} {
    %c0_i32 = arith.constant 0 : i32
    %0 = arith.cmpi eq, %arg1, %c0_i32 : i32
    %1 = arith.extui %0 : i1 to i32
    %c0_i32_0 = arith.constant 0 : i32
    %2 = arith.cmpi ne, %1, %c0_i32_0 : i32
    scf.if %2 {
      %cst_10 = arith.constant 0.000000e+00 : f32
      %15 = vector.broadcast %cst_10 : f32 to vector<1x8x128xf32>
      %c0_11 = arith.constant 0 : index
      %c0_12 = arith.constant 0 : index
      %c0_13 = arith.constant 0 : index
      %16 = vector.load %arg4[%c0_11, %c0_12, %c0_13] : memref<1x8x128xf32, #tpu.memory_space<vmem>>, vector<1x8x128xf32>
      tpu.vector_store %arg4[%c0_11, %c0_12, %c0_13], %15 {strides = array<i32>} : memref<1x8x128xf32, #tpu.memory_space<vmem>>, vector<1x8x128xf32>,
    } else {
    }
    %c0 = arith.constant 0 : index
    %c0_1 = arith.constant 0 : index
    %3 = vector.load %arg2[%c0, %c0_1] : memref<24x128xf32, #tpu.memory_space<vmem>>, vector<24x128xf32>
    %c0_2 = arith.constant 0 : index
    %c0_3 = arith.constant 0 : index
    %4 = vector.load %arg3[%c0_2, %c0_3] : memref<24x128xf32, #tpu.memory_space<vmem>>, vector<24x128xf32>
    %5 = arith.subf %3, %4 : vector<24x128xf32>
    %6 = math.absf %5 : vector<24x128xf32>
    %7 = vector.shape_cast %6 : vector<24x128xf32> to vector<3x8x128xf32>
    %cst = arith.constant dense<0.000000e+00> : vector<8x128xf32>
    %8 = vector.multi_reduction <add>, %7, %cst [0] : vector<3x8x128xf32> to vector<8x128xf32>
    %c0_4 = arith.constant 0 : index
    %c0_5 = arith.constant 0 : index
    %c0_6 = arith.constant 0 : index
    %9 = vector.load %arg4[%c0_4, %c0_5, %c0_6] : memref<1x8x128xf32, #tpu.memory_space<vmem>>, vector<1x8x128xf32>
    %10 = vector.shape_cast %9 : vector<1x8x128xf32> to vector<8x128xf32>
    %11 = arith.addf %10, %8 : vector<8x128xf32>
    %c0_7 = arith.constant 0 : index
    %c0_8 = arith.constant 0 : index
    %c0_9 = arith.constant 0 : index
    %12 = vector.load %arg4[%c0_7, %c0_8, %c0_9] : memref<1x8x128xf32, #tpu.memory_space<vmem>>, vector<1x8x128xf32>
    %13 = vector.shape_cast %12 : vector<1x8x128xf32> to vector<8x128xf32>
    %14 = vector.shape_cast %11 : vector<8x128xf32> to vector<1x8x128xf32>
    tpu.vector_store %arg4[%c0_7, %c0_8, %c0_9], %14 {strides = array<i32>} : memref<1x8x128xf32, #tpu.memory_space<vmem>>, vector<1x8x128xf32>,
    return
  }
  func.func @transform_0(%arg0: i32, %arg1: i32) -> (i32, i32) {
    %c1_i32 = arith.constant 1 : i32
    %0 = arith.muli %arg0, %c1_i32 : i32
    %1 = arith.addi %0, %arg1 : i32
    %c0_i32 = arith.constant 0 : i32
    %c0_i32_0 = arith.constant 0 : i32
    return %1, %c0_i32 : i32, i32
  }
  func.func @transform_1(%arg0: i32, %arg1: i32) -> (i32, i32) {
    %c1_i32 = arith.constant 1 : i32
    %0 = arith.muli %arg0, %c1_i32 : i32
    %1 = arith.addi %0, %arg1 : i32
    %c0_i32 = arith.constant 0 : i32
    %c0_i32_0 = arith.constant 0 : i32
    return %1, %c0_i32 : i32, i32
  }
  func.func @transform_2(%arg0: i32, %arg1: i32) -> (i32, i32, i32) {
    %c0_i32 = arith.constant 0 : i32
    %c0_i32_0 = arith.constant 0 : i32
    %c0_i32_1 = arith.constant 0 : i32
    return %arg0, %c0_i32, %c0_i32_0 : i32, i32, i32
  }
}

</mosaic_0001>

<llo_original>
// kernel: fft_loss_pallas.1
$region0: #{fft_loss_pallas.1}
  #allocation0 [shape = 'u32[]', space=smem, size = 0x4, offset = 0x4, fixed_abs, tag = 'smem constant byte address 0x4 - core index']
  #allocation1 [shape = 'u32[144,128]{1,0:T(1,128)}', space=vmem, size = 0x12000, scoped, tag = 'internal scratch']
  %s0 = inlined_call_operand.vmem [shape: f32[24,128], index: 0, kind: input, shape index: {}]
  %s1 = inlined_call_operand.vmem [shape: f32[24,128], index: 1, kind: input, shape index: {}]
  %s2 = inlined_call_operand.vmem [shape: f32[1,8,128], index: 2, kind: output, shape index: {}]
  %s3 = sld [smem:[#allocation0]]
  $region22: #{fft_loss_pallas.1} parent=0
    _
  %s5 = ssub.s32 1, %s3
  %s6 = scalar_select 0, %s5, %s3
  // Predicated region
  $region2: #{fft_loss_pallas.1} parent=0 // pred_check
    _
  $region3: #{fft_loss_pallas.1} parent=0 // pred_check_branch
    %8 = sbr.rel (0) target = $region5
  $region4: #{fft_loss_pallas.1} parent=0 // pred_region
    %s9 = sadd.s32 0, 0
    %s10 = smul.u32 3, %s9
    %p11 = scmp.lt.s32.totalorder %s10, 2
    %s12 = scalar_select %p11, %s10, 2
    %s13 = smul.addr %s12, 8
    %s14 = scalar_lea.vmem %s0, %s13
    %s15 = sadd.s32 0, 0
    %s16 = smul.u32 3, %s15
  $region5: #{fft_loss_pallas.1} parent=0 // pred_fallthru
    _
  // Predicated region
  $region6: #{fft_loss_pallas.1} parent=0 // pred_check
    _
  $region7: #{fft_loss_pallas.1} parent=0 // pred_check_branch
    %18 = sbr.rel (0) target = $region9
  $region8: #{fft_loss_pallas.1} parent=0 // pred_region
    %s19 = sadd.s32 0, 0
    %s20 = smul.u32 3, %s19
    %p21 = scmp.lt.s32.totalorder %s20, 2
    %s22 = scalar_select %p21, %s20, 2
    %s23 = smul.addr %s22, 8
    %s24 = scalar_lea.vmem %s1, %s23
    %s25 = sadd.s32 0, 0
    %s26 = smul.u32 3, %s25
  $region9: #{fft_loss_pallas.1} parent=0 // pred_fallthru
    _
  %s27 = sadd.s32 0, 0
  %s28 = smul.u32 3, %s27
  %p29 = scmp.lt.s32.totalorder %s28, 2
  %s30 = scalar_select %p29, %s28, 2
  %s31 = smul.addr %s30, 8
  %s32 = scalar_lea.vmem %s0, %s31
  %s33 = sadd.s32 0, 0
  %s34 = smul.u32 3, %s33
  %p35 = scmp.lt.s32.totalorder %s34, 2
  %s36 = scalar_select %p35, %s34, 2
  %s37 = smul.addr %s36, 8
  %s38 = scalar_lea.vmem %s1, %s37
  %s39 = sadd.s32 0, 0
  %s40 = smul.u32 3, %s39
  %p41 = scmp.lt.s32.totalorder %s40, 2
  %s42 = scalar_select %p41, %s40, 2
  %s43 = smul.addr %s42, 8
  %s44 = scalar_lea.vmem %s0, %s43
  %s45 = sadd.s32 0, 0
  %s46 = smul.u32 3, %s45
  %s47 = sadd.s32 0, 0
  %s48 = smul.u32 3, %s47
  %p49 = scmp.lt.s32.totalorder %s48, 2
  %s50 = scalar_select %p49, %s48, 2
  %s51 = smul.addr %s50, 8
  %s52 = scalar_lea.vmem %s1, %s51
  %s53 = sadd.s32 0, 0
  %s54 = smul.u32 3, %s53
  %p55 = scmp.eq.s32.totalorder 0, 0
  // Predicated region
  $region10: #{fft_loss_pallas.1} parent=0 // pred_check
    %p56 = pneg %p55
  $region11: #{fft_loss_pallas.1} parent=0 // pred_check_branch
    %58 = sbr.rel (%p56) target = $region13
  $region12: #{fft_loss_pallas.1} parent=0 // pred_region
    %59 = vst [vmem:[%s2] sm:$0xff] 0.0
  $region13: #{fft_loss_pallas.1} parent=0 // pred_fallthru
    _
  %v60 = vld [vmem:[%s44] sm:$0xff]
  %v61 = vld [vmem:[%s44 + $0x8] sm:$0xff]
  %v62 = vld [vmem:[%s44 + $0x10] sm:$0xff]
  %v63 = vld [vmem:[%s52] sm:$0xff]
  %v64 = vld [vmem:[%s52 + $0x8] sm:$0xff]
  %v65 = vld [vmem:[%s52 + $0x10] sm:$0xff]
  %v66 = vsub.f32 %v60, %v63
  %v67 = vsub.f32 %v61, %v64
  %v68 = vsub.f32 %v62, %v65
  %v69 = vand.u32 2147483647, %v66
  %v70 = vand.u32 2147483647, %v67
  %v71 = vand.u32 2147483647, %v68
  %v72 = vadd.f32 %v69, %v70
  %v73 = vadd.f32 %v72, %v71
  %v74 = vld [vmem:[%s2] sm:$0xff]
  %v75 = vadd.f32 %v74, %v73
  %76 = vst [vmem:[%s2] sm:$0xff] %v75
  // Predicated region
  $region14: #{fft_loss_pallas.1} parent=0 // pred_check
    _
  $region15: #{fft_loss_pallas.1} parent=0 // pred_check_branch
    %78 = sbr.rel (0) target = $region17
  $region16: #{fft_loss_pallas.1} parent=0 // pred_region
    _
  $region17: #{fft_loss_pallas.1} parent=0 // pred_fallthru
    _
  // Predicated region
  $region18: #{fft_loss_pallas.1} parent=0 // pred_check
    _
  $region19: #{fft_loss_pallas.1} parent=0 // pred_check_branch
    %80 = sbr.rel (0) target = $region21
  $region20: #{fft_loss_pallas.1} parent=0 // pred_region
    _
  $region21: #{fft_loss_pallas.1} parent=0 // pred_fallthru
    _

</llo_original>
